<compile_context>
chip_gen: v7x
topology: tpu7x:2x2x1
jax: 0.10.0
libtpu: 0.0.40
codegen_flags: <defaults>
</compile_context>

<pallas_src>
import jax
import jax.numpy as jnp
from jax.experimental import pallas as pl
from jax.experimental.pallas import tpu as pltpu


def _round_up(n, m):
    return ((n + m - 1) // m) * m


def _choose_block_m(M):
    """Rows (= padded-batch x ODE-evals) per grid step.

    ~512 rows (~64 evals at B_pad=8) per step amortizes the ~0.35 us grid-step
    overhead; a >512-row problem keeps a >=2-long 'parallel' grid so v7x's
    second TensorCore gets work.  Tiny problems run as a single grid step."""
    if M <= 512:
        return max(8, _round_up(M, 8))
    return 512


# ------------------------------ Pallas kernel ------------------------------

def _ode_mlp_kernel(x_ref, bias_ref, w1x_ref, w2_ref, b2_ref, out_ref):
    """One grid step = one fused MLP over a chunk of flattened evaluations.

    x_ref   : VMEM (block_m, state_dim)   -- flattened (eval, batch) rows of x
    bias_ref: VMEM (block_m, H)           -- pre-folded cur*w1c + t*w1t + b1
    w1x_ref : VMEM (state_dim, H)         -- rows of W1 that multiply x
    w2_ref  : VMEM (H, out_pad)           -- lane-dense (zero-padded past state_dim)
    b2_ref  : VMEM (1, out_pad)
    out_ref : VMEM (block_m, out_pad)     -- lane-dense output
    """
    sd = x_ref.shape[1]
    if sd <= 8:
        # K is tiny: a 4x32 MXU pass is all push/pop latency for no work ->
        # do the first layer as `sd` rank-1 FMAs on the (otherwise idle) VPU.
        pre = bias_ref[...]
        x = x_ref[...]
        for k in range(sd):                           # static unroll (sd small)
            pre = pre + x[:, k:k + 1] * w1x_ref[k:k + 1, :]
    else:
        pre = (jnp.dot(x_ref[...], w1x_ref[...],
                       preferred_element_type=jnp.float32)
               + bias_ref[...])
    h = jnp.tanh(pre)
    y = jnp.dot(h, w2_ref[...], preferred_element_type=jnp.float32) + b2_ref[...]
    out_ref[...] = y.astype(out_ref.dtype)            # full unmasked lane-dense vst


def _ode_mlp(x_flat, bias_flat, w1x, w2p, b2p, block_m):
    """x_flat: (M_pad, sd), bias_flat: (M_pad, H) -> (M_pad, out_pad)."""
    M_pad, sd = x_flat.shape
    H = bias_flat.shape[1]
    out_pad = w2p.shape[1]
    grid = (M_pad // block_m,)
    return pl.pallas_call(
        _ode_mlp_kernel,
        out_shape=jax.ShapeDtypeStruct((M_pad, out_pad), jnp.float32),
        grid=grid,
        in_specs=[
            # per-chunk row blocks (pipelined HBM<->VMEM)
            pl.BlockSpec((block_m, sd), lambda i: (i, 0)),
            pl.BlockSpec((block_m, H), lambda i: (i, 0)),
            # constant blocks -> VMEM-resident across the whole grid
            pl.BlockSpec((sd, H), lambda i: (0, 0)),
            pl.BlockSpec((H, out_pad), lambda i: (0, 0)),
            pl.BlockSpec((1, out_pad), lambda i: (0, 0)),
        ],
        out_specs=pl.BlockSpec((block_m, out_pad), lambda i: (i, 0)),
        compiler_params=pltpu.CompilerParams(
            dimension_semantics=("parallel",)),       # row chunks are independent
    )(x_flat, bias_flat, w1x, w2p, b2p)


# ------------------------------ Module wrapper ------------------------------

def init_odefunc_params(state_dim, hidden_dim, key):
    """Xavier-uniform weights, zero biases (matches ODEFunc._initialize_weights).

    W1 is stored pre-split into its x / current / time rows and W2, b2 are
    pre-padded to a lane-dense (H, 128k) layout, so the per-call path carries
    no parameter slicing, concatenation, or padding."""
    k1, k2 = jax.random.split(key)
    in1 = state_dim + 2
    lim1 = (6.0 / (in1 + hidden_dim)) ** 0.5
    w1 = jax.random.uniform(k1, (in1, hidden_dim), jnp.float32, -lim1, lim1)
    lim2 = (6.0 / (hidden_dim + state_dim)) ** 0.5
    w2 = jax.random.uniform(k2, (hidden_dim, state_dim), jnp.float32, -lim2, lim2)
    out_pad = _round_up(state_dim, 128)
    return dict(
        w1x=w1[:state_dim],
        w1c=w1[state_dim:state_dim + 1],
        w1t=w1[state_dim + 1:state_dim + 2],
        b1=jnp.zeros((1, hidden_dim), jnp.float32),
        w2p=jnp.pad(w2, ((0, 0), (0, out_pad - state_dim))),
        b2p=jnp.zeros((1, out_pad), jnp.float32),
    )


def pad_current_profile(current_profile, sublane=8):
    """ODEFunc.set_current_profile: (B, T, 1) -> (B_pad, T) f32, batch padded to 8."""
    cp = jnp.asarray(current_profile, jnp.float32)[..., 0]          # (B, T)
    B, T = cp.shape
    return jnp.pad(cp, ((0, _round_up(B, sublane) - B), (0, 0)))


@jax.jit
def odefunc_forward_steps(ts, xs, prof_padded, params):
    """Evaluate the ODE function at S (t, x) pairs in ONE pallas_call.

    ts: (S,), xs: (S, B, state_dim), prof_padded: output of pad_current_profile.
    Returns (S, B, state_dim)."""
    ts = jnp.asarray(ts, jnp.float32)
    xs = jnp.asarray(xs, jnp.float32)
    S, B, sd = xs.shape
    B_pad, T = prof_padded.shape
    H = params["w1x"].shape[1]

    # time_idx = int(t * (T-1)) (truncation toward zero), clamped to [0, T-1].
    # TODO(synk): the clamp (and trunc-vs-floor for t<0) differs from PyTorch
    # only if the ODE solver ever evaluates t outside [0, 1].
    time_idx = jnp.clip((ts * (T - 1)).astype(jnp.int32), 0, T - 1)

    # Hoisted time gather: current_profile[:, time_idx]  -> (S, B_pad).
    cur = jnp.take(prof_padded, time_idx, axis=1).T

    # Pre-folded per-evaluation bias: cur*w1c + t*w1t + b1 -> (S, B_pad, H).
    bias = (cur[:, :, None] * params["w1c"][None, :, :]
            + ts[:, None, None] * params["w1t"][None, :, :]
            + params["b1"][None, :, :])

    # Collapse S into the matmul M (sublane) dimension.
    xs_p = jnp.pad(xs, ((0, 0), (0, B_pad - B), (0, 0)))            # (S, B_pad, sd)
    M = S * B_pad
    x_flat = xs_p.reshape(M, sd)
    bias_flat = bias.reshape(M, H)

    block_m = _choose_block_m(M)
    M_pad = _round_up(M, block_m)
    x_flat = jnp.pad(x_flat, ((0, M_pad - M), (0, 0)))
    bias_flat = jnp.pad(bias_flat, ((0, M_pad - M), (0, 0)))

    out_flat = _ode_mlp(x_flat, bias_flat,
                        params["w1x"], params["w2p"], params["b2p"], block_m)
    # Drop lane padding, row padding and padded batch rows in the wrapper.
    return out_flat[:M, :sd].reshape(S, B_pad, sd)[:, :B, :]


def odefunc_forward(t, x, prof_padded, params):
    """ODEFunc.forward(t, x): t scalar, x (B, state_dim) -> (B, state_dim)."""
    t_arr = jnp.reshape(jnp.asarray(t, jnp.float32), (1,))
    x_arr = jnp.asarray(x, jnp.float32)[None, ...]
    return odefunc_forward_steps(t_arr, x_arr, prof_padded, params)[0]


# ---------------------------------- main ------------------------------------

if __name__ == "__main__":
    state_dim = 4
    hidden_dim = 32
    batch = 2
    profile_len = 8
    nominal_voltage = 22.2

    key = jax.random.PRNGKey(0)
    k_params, k_x, k_prof = jax.random.split(key, 3)

    params = init_odefunc_params(state_dim, hidden_dim, k_params)
    x = jax.random.normal(k_x, (batch, state_dim), jnp.float32)

    # synthetic current profile (power / nominal_voltage), shape (B, T, 1)
    power_profile = jax.random.uniform(
        k_prof, (batch, profile_len, 1), jnp.float32, 50.0, 150.0)
    current_profile = power_profile / nominal_voltage
    prof_padded = pad_current_profile(current_profile)   # == set_current_profile

    # --- single ODE-function evaluation (matches ODEFunc.forward) ---
    t = 0.3
    out = odefunc_forward(t, x, prof_padded, params)
    jax.block_until_ready(out)

    # --- amortized multi-evaluation: one pallas_call for S evaluations ---
    n_steps = 5
    ts = jnp.linspace(0.0, 1.0, n_steps, dtype=jnp.float32)
    xs = x[None, :, :] + 0.1 * jnp.arange(n_steps, dtype=jnp.float32)[:, None, None]
    outs = odefunc_forward_steps(ts, xs, prof_padded, params)
    jax.block_until_ready(outs)

    # --- plain-JAX reference mirroring the PyTorch forward ---
    w1_full = jnp.concatenate([params["w1x"], params["w1c"], params["w1t"]], axis=0)
    b1_full = params["b1"]
    w2_full = params["w2p"][:, :state_dim]
    b2_full = params["b2p"][:, :state_dim]

    def reference(t_val, x_val):
        ti = int(float(t_val) * (profile_len - 1))
        ti = min(max(ti, 0), profile_len - 1)
        cur = current_profile[:, ti, :]                       # (B, 1)
        tt = jnp.full((batch, 1), float(t_val), jnp.float32)
        inp = jnp.concatenate([x_val, cur, tt], axis=-1)
        return jnp.tanh(inp @ w1_full + b1_full) @ w2_full + b2_full

    ref = reference(t, x)
    assert out.shape == (batch, state_dim)
    assert jnp.allclose(out, ref, atol=1e-4, rtol=1e-4), "single-step mismatch"

    assert outs.shape == (n_steps, batch, state_dim)
    for s in range(n_steps):
        ref_s = reference(ts[s], xs[s])
        assert jnp.allclose(outs[s], ref_s, atol=1e-4, rtol=1e-4), f"step {s} mismatch"

    print("KERNEL_OK")
</pallas_src>

<mosaic_0001>
module attributes {stable_mosaic.version = 11 : i64} {
  func.func @_ode_mlp_kernel(%arg0: i32, %arg1: memref<8x4xf32, #tpu.memory_space<vmem>>, %arg2: memref<8x32xf32, #tpu.memory_space<vmem>>, %arg3: memref<4x32xf32, #tpu.memory_space<vmem>>, %arg4: memref<32x128xf32, #tpu.memory_space<vmem>>, %arg5: memref<1x128xf32, #tpu.memory_space<vmem>>, %arg6: memref<8x128xf32, #tpu.memory_space<vmem>>) attributes {dimension_semantics = [#tpu.dimension_semantics<parallel>], iteration_bounds = array<i64: 1>, scalar_prefetch = 0 : i64, scratch_operands = 0 : i64, tpu.core_type = #tpu.core_type<tc>, window_params = [{transform_indices = @transform_0, window_bounds = array<i64: 8, 4>}, {transform_indices = @transform_1, window_bounds = array<i64: 8, 32>}, {pipeline_mode = #tpu.pipeline_mode<synchronous>, transform_indices = @transform_2, window_bounds = array<i64: 4, 32>}, {pipeline_mode = #tpu.pipeline_mode<synchronous>, transform_indices = @transform_3, window_bounds = array<i64: 32, 128>}, {pipeline_mode = #tpu.pipeline_mode<synchronous>, transform_indices = @transform_4, window_bounds = array<i64: 1, 128>}, {transform_indices = @transform_5, window_bounds = array<i64: 8, 128>}]} {
    %c0 = arith.constant 0 : index
    %c0_0 = arith.constant 0 : index
    %0 = vector.load %arg2[%c0, %c0_0] : memref<8x32xf32, #tpu.memory_space<vmem>>, vector<8x32xf32>
    %c0_1 = arith.constant 0 : index
    %c0_2 = arith.constant 0 : index
    %1 = vector.load %arg1[%c0_1, %c0_2] : memref<8x4xf32, #tpu.memory_space<vmem>>, vector<8x4xf32>
    %2 = vector.extract_strided_slice %1 {offsets = [0, 0], sizes = [8, 1], strides = [1, 1]} : vector<8x4xf32> to vector<8x1xf32>
    %c0_3 = arith.constant 0 : index
    %c0_4 = arith.constant 0 : index
    %3 = vector.load %arg3[%c0_3, %c0_4] : memref<4x32xf32, #tpu.memory_space<vmem>>, vector<1x32xf32>
    %4 = vector.broadcast %2 : vector<8x1xf32> to vector<8x32xf32>
    %5 = vector.broadcast %3 : vector<1x32xf32> to vector<8x32xf32>
    %6 = arith.mulf %4, %5 : vector<8x32xf32>
    %7 = arith.addf %0, %6 : vector<8x32xf32>
    %8 = vector.extract_strided_slice %1 {offsets = [0, 1], sizes = [8, 1], strides = [1, 1]} : vector<8x4xf32> to vector<8x1xf32>
    %c1 = arith.constant 1 : index
    %c0_5 = arith.constant 0 : index
    %9 = vector.load %arg3[%c1, %c0_5] : memref<4x32xf32, #tpu.memory_space<vmem>>, vector<1x32xf32>
    %10 = vector.broadcast %8 : vector<8x1xf32> to vector<8x32xf32>
    %11 = vector.broadcast %9 : vector<1x32xf32> to vector<8x32xf32>
    %12 = arith.mulf %10, %11 : vector<8x32xf32>
    %13 = arith.addf %7, %12 : vector<8x32xf32>
    %14 = vector.extract_strided_slice %1 {offsets = [0, 2], sizes = [8, 1], strides = [1, 1]} : vector<8x4xf32> to vector<8x1xf32>
    %c2 = arith.constant 2 : index
    %c0_6 = arith.constant 0 : index
    %15 = vector.load %arg3[%c2, %c0_6] : memref<4x32xf32, #tpu.memory_space<vmem>>, vector<1x32xf32>
    %16 = vector.broadcast %14 : vector<8x1xf32> to vector<8x32xf32>
    %17 = vector.broadcast %15 : vector<1x32xf32> to vector<8x32xf32>
    %18 = arith.mulf %16, %17 : vector<8x32xf32>
    %19 = arith.addf %13, %18 : vector<8x32xf32>
    %20 = vector.extract_strided_slice %1 {offsets = [0, 3], sizes = [8, 1], strides = [1, 1]} : vector<8x4xf32> to vector<8x1xf32>
    %c3 = arith.constant 3 : index
    %c0_7 = arith.constant 0 : index
    %21 = vector.load %arg3[%c3, %c0_7] : memref<4x32xf32, #tpu.memory_space<vmem>>, vector<1x32xf32>
    %22 = vector.broadcast %20 : vector<8x1xf32> to vector<8x32xf32>
    %23 = vector.broadcast %21 : vector<1x32xf32> to vector<8x32xf32>
    %24 = arith.mulf %22, %23 : vector<8x32xf32>
    %25 = arith.addf %19, %24 : vector<8x32xf32>
    %26 = math.tanh %25 : vector<8x32xf32>
    %c0_8 = arith.constant 0 : index
    %c0_9 = arith.constant 0 : index
    %27 = vector.load %arg4[%c0_8, %c0_9] : memref<32x128xf32, #tpu.memory_space<vmem>>, vector<32x128xf32>
    %cst = arith.constant dense<0.000000e+00> : vector<8x128xf32>
    %28 = tpu.matmul %26, %27, %cst {dimension_numbers = #tpu.dot_dimension_numbers<[1], [0], [0], [1], [0, 0, 1, 1], [], []>} : vector<8x32xf32>, vector<32x128xf32>, vector<8x128xf32> -> vector<8x128xf32>
    %c0_10 = arith.constant 0 : index
    %c0_11 = arith.constant 0 : index
    %29 = vector.load %arg5[%c0_10, %c0_11] : memref<1x128xf32, #tpu.memory_space<vmem>>, vector<1x128xf32>
    %30 = vector.broadcast %29 : vector<1x128xf32> to vector<8x128xf32>
    %31 = arith.addf %28, %30 : vector<8x128xf32>
    %c0_12 = arith.constant 0 : index
    %c0_13 = arith.constant 0 : index
    %32 = vector.load %arg6[%c0_12, %c0_13] : memref<8x128xf32, #tpu.memory_space<vmem>>, vector<8x128xf32>
    tpu.vector_store %arg6[%c0_12, %c0_13], %31 {strides = array<i32>} : memref<8x128xf32, #tpu.memory_space<vmem>>, vector<8x128xf32>,
    return
  }
  func.func @transform_0(%arg0: i32) -> (i32, i32) {
    %c0_i32 = arith.constant 0 : i32
    %c0_i32_0 = arith.constant 0 : i32
    return %arg0, %c0_i32 : i32, i32
  }
  func.func @transform_1(%arg0: i32) -> (i32, i32) {
    %c0_i32 = arith.constant 0 : i32
    %c0_i32_0 = arith.constant 0 : i32
    return %arg0, %c0_i32 : i32, i32
  }
  func.func @transform_2(%arg0: i32) -> (i32, i32) {
    %c0_i32 = arith.constant 0 : i32
    %c0_i32_0 = arith.constant 0 : i32
    %c0_i32_1 = arith.constant 0 : i32
    return %c0_i32, %c0_i32_0 : i32, i32
  }
  func.func @transform_3(%arg0: i32) -> (i32, i32) {
    %c0_i32 = arith.constant 0 : i32
    %c0_i32_0 = arith.constant 0 : i32
    %c0_i32_1 = arith.constant 0 : i32
    return %c0_i32, %c0_i32_0 : i32, i32
  }
  func.func @transform_4(%arg0: i32) -> (i32, i32) {
    %c0_i32 = arith.constant 0 : i32
    %c0_i32_0 = arith.constant 0 : i32
    %c0_i32_1 = arith.constant 0 : i32
    return %c0_i32, %c0_i32_0 : i32, i32
  }
  func.func @transform_5(%arg0: i32) -> (i32, i32) {
    %c0_i32 = arith.constant 0 : i32
    %c0_i32_0 = arith.constant 0 : i32
    return %arg0, %c0_i32 : i32, i32
  }
}

</mosaic_0001>

<llo_original>
// kernel: odefunc_forward_steps.1
$region0: #{odefunc_forward_steps.1}
  #allocation0 [shape = 'u32[]', space=smem, size = 0x4, offset = 0x4, fixed_abs, tag = 'smem constant byte address 0x4 - core index']
  #allocation1 [shape = 'u32[144,128]{1,0:T(1,128)}', space=vmem, size = 0x12000, scoped, tag = 'internal scratch']
  %s0 = inlined_call_operand.vmem [shape: f32[8,4], index: 0, kind: input, shape index: {}]
  %s1 = inlined_call_operand.vmem [shape: f32[8,32], index: 1, kind: input, shape index: {}]
  %s2 = inlined_call_operand.vmem [shape: f32[4,32], index: 2, kind: input, shape index: {}]
  %s3 = inlined_call_operand.vmem [shape: f32[32,128], index: 3, kind: input, shape index: {}]
  %s4 = inlined_call_operand.vmem [shape: f32[1,128], index: 4, kind: input, shape index: {}]
  %s5 = inlined_call_operand.vmem [shape: f32[8,128], index: 5, kind: output, shape index: {}]
  %s6 = sld [smem:[#allocation0]]
  $region30: #{odefunc_forward_steps.1} parent=0
    _
  %s8 = ssub.s32 1, %s6
  %s9 = scalar_select 0, %s8, %s6
  // Predicated region
  $region2: #{odefunc_forward_steps.1} parent=0 // pred_check
    _
  $region3: #{odefunc_forward_steps.1} parent=0 // pred_check_branch
    %11 = sbr.rel (0) target = $region5
  $region4: #{odefunc_forward_steps.1} parent=0 // pred_region
    _
  $region5: #{odefunc_forward_steps.1} parent=0 // pred_fallthru
    _
  // Predicated region
  $region6: #{odefunc_forward_steps.1} parent=0 // pred_check
    _
  $region7: #{odefunc_forward_steps.1} parent=0 // pred_check_branch
    %13 = sbr.rel (0) target = $region9
  $region8: #{odefunc_forward_steps.1} parent=0 // pred_region
    _
  $region9: #{odefunc_forward_steps.1} parent=0 // pred_fallthru
    _
  // Predicated region
  $region10: #{odefunc_forward_steps.1} parent=0 // pred_check
    _
  $region11: #{odefunc_forward_steps.1} parent=0 // pred_check_branch
    %15 = sbr.rel (0) target = $region13
  $region12: #{odefunc_forward_steps.1} parent=0 // pred_region
    _
  $region13: #{odefunc_forward_steps.1} parent=0 // pred_fallthru
    _
  // Predicated region
  $region14: #{odefunc_forward_steps.1} parent=0 // pred_check
    _
  $region15: #{odefunc_forward_steps.1} parent=0 // pred_check_branch
    %17 = sbr.rel (0) target = $region17
  $region16: #{odefunc_forward_steps.1} parent=0 // pred_region
    _
  $region17: #{odefunc_forward_steps.1} parent=0 // pred_fallthru
    _
  // Predicated region
  $region18: #{odefunc_forward_steps.1} parent=0 // pred_check
    _
  $region19: #{odefunc_forward_steps.1} parent=0 // pred_check_branch
    %19 = sbr.rel (0) target = $region21
  $region20: #{odefunc_forward_steps.1} parent=0 // pred_region
    _
  $region21: #{odefunc_forward_steps.1} parent=0 // pred_fallthru
    _
  %v20 = vld [vmem:[%s1] sm:$0xff]
  %v21 = vld [vmem:[%s0] sm:$0xff]
  %v22 = vld [vmem:[%s2] sm:$0x1]
  %24 = vset.pattern.permute.xlu0 0
  %25 = vperm.xlu0 %24, %v21
  %v26 = vpop.permute.xlu0 %25
  %v28 = vlaneseq
  %v29 = vshrl.u32 %v28, 7
  %v30 = vsub.s32 0, %v29
  %v31 = vrot.slane %v22, %v30
  %v32 = vmul.f32 %v26, %v31
  %v33 = vadd.f32 %v20, %v32
  %v34 = vld [vmem:[%s2 + $0x1] sm:$0x1]
  %35 = vset.pattern.permute.xlu0 1
  %36 = vperm.xlu0 %35, %v21
  %v37 = vpop.permute.xlu0 %36
  %v39 = vlaneseq
  %v40 = vshrl.u32 %v39, 7
  %v41 = vsub.s32 0, %v40
  %v42 = vrot.slane %v34, %v41
  %v43 = vmul.f32 %v37, %v42
  %v44 = vadd.f32 %v33, %v43
  %v45 = vld [vmem:[%s2 + $0x2] sm:$0x1]
  %46 = vset.pattern.permute.xlu0 2
  %47 = vperm.xlu0 %46, %v21
  %v48 = vpop.permute.xlu0 %47
  %v50 = vlaneseq
  %v51 = vshrl.u32 %v50, 7
  %v52 = vsub.s32 0, %v51
  %v53 = vrot.slane %v45, %v52
  %v54 = vmul.f32 %v48, %v53
  %v55 = vadd.f32 %v44, %v54
  %v56 = vld [vmem:[%s2 + $0x3] sm:$0x1]
  %57 = vset.pattern.permute.xlu0 3
  %58 = vperm.xlu0 %57, %v21
  %v59 = vpop.permute.xlu0 %58
  %v61 = vlaneseq
  %v62 = vshrl.u32 %v61, 7
  %v63 = vsub.s32 0, %v62
  %v64 = vrot.slane %v56, %v63
  %v65 = vmul.f32 %v59, %v64
  %v66 = vadd.f32 %v55, %v65
  %v67 = vtanh.pop %v66
  %v68 = vld [vmem:[%s3] sm:$0xff]
  %v69 = vld [vmem:[%s3 + $0x8] sm:$0xff]
  %v70 = vld [vmem:[%s3 + $0x10] sm:$0xff]
  %v71 = vld [vmem:[%s3 + $0x18] sm:$0xff]
  %v72 = vld [vmem:[%s4] sm:$0x1]
  %v74 = vlaneseq
  %v75 = vshrl.u32 %v74, 7
  %v76 = vsub.s32 0, %v75
  %v77 = vrot.slane %v72, %v76
  %vm79 = vcmask 261120
  %v81 = vsel %vm79, %v67, 0
  %83 = vmatprep.subr.mxu0 0.0
  %84 = vmatpush1.msra.mxu0 %v68
  %85 = vmatprep.subr.mxu0 0.0
  %86 = vmatpush1.msra.mxu0 %v69
  %87 = vmatprep.subr.mxu0 0.0
  %88 = vmatpush1.msra.mxu0 %v70
  %89 = vmatprep.subr.mxu0 0.0
  %90 = vmatpush1.msra.mxu0 %v71
  %91 = vmatprep.subr.mxu0 0.0
  %92 = vmatpush1.msra.mxu0 0.0
  %93 = vmatprep.subr.mxu0 0.0
  %94 = vmatpush1.msra.mxu0 0.0
  %95 = vmatprep.subr.mxu0 0.0
  %96 = vmatpush1.msra.mxu0 0.0
  %97 = vmatprep.subr.mxu0 0.0
  %98 = vmatpush1.msra.mxu0 0.0
  %99 = vmatprep.subr.mxu0 0.0
  %100 = vmatpush1.msra.mxu0 0.0
  %101 = vmatprep.subr.mxu0 0.0
  %102 = vmatpush1.msra.mxu0 0.0
  %103 = vmatprep.subr.mxu0 0.0
  %104 = vmatpush1.msra.mxu0 0.0
  %105 = vmatprep.subr.mxu0 0.0
  %106 = vmatpush1.msra.mxu0 0.0
  %107 = vmatprep.subr.mxu0 0.0
  %108 = vmatpush1.msra.mxu0 0.0
  %109 = vmatprep.subr.mxu0 0.0
  %110 = vmatpush1.msra.mxu0 0.0
  %111 = vmatprep.subr.mxu0 0.0
  %112 = vmatpush1.msra.mxu0 0.0
  %113 = vmatprep.subr.mxu0 0.0
  %114 = vmatpush1.msra.mxu0 0.0
  %115 = vmatprep.subr.mxu0 0.0
  %116 = vmatpush1.msra.mxu0 0.0
  %117 = vmatprep.subr.mxu0 0.0
  %118 = vmatpush1.msra.mxu0 0.0
  %119 = vmatprep.subr.mxu0 0.0
  %120 = vmatpush1.msra.mxu0 0.0
  %121 = vmatprep.subr.mxu0 0.0
  %122 = vmatpush1.msra.mxu0 0.0
  %123 = vmatprep.subr.mxu0 0.0
  %124 = vmatpush1.msra.mxu0 0.0
  %125 = vmatprep.subr.mxu0 0.0
  %126 = vmatpush1.msra.mxu0 0.0
  %127 = vmatprep.subr.mxu0 0.0
  %128 = vmatpush1.msra.mxu0 0.0
  %129 = vmatprep.subr.mxu0 0.0
  %130 = vmatpush1.msra.mxu0 0.0
  %131 = vmatprep.subr.mxu0 0.0
  %132 = vmatpush1.msra.mxu0 0.0
  %133 = vmatprep.subr.mxu0 0.0
  %134 = vmatpush1.msra.mxu0 0.0
  %135 = vmatprep.subr.mxu0 0.0
  %136 = vmatpush1.msra.mxu0 0.0
  %137 = vmatprep.subr.mxu0 0.0
  %138 = vmatpush1.msra.mxu0 0.0
  %139 = vmatprep.subr.mxu0 0.0
  %140 = vmatpush1.msra.mxu0 0.0
  %141 = vmatprep.subr.mxu0 0.0
  %142 = vmatpush1.msra.mxu0 0.0
  %143 = vmatprep.subr.mxu0 0.0
  %144 = vmatpush1.msra.mxu0 0.0
  %145 = vmatprep.subr.mxu0 0.0
  %146 = vmatpush1.msra.mxu0 0.0
  %147 = vmatprep.mubr.f32.mxu0 0.0
  %148 = vmatmul.mubr.f32.gmra.mrb[0].mxu0 %v81
  %v149 = vpop.f32.mrb[0].mxu0
  %v150 = vadd.f32 %v77, %v149
  %v151 = vpop.f32.mrb[0].mxu0
  %152 = vdwg.mxu0
  %153 = vst [vmem:[%s5] sm:$0xff] %v150
  // Predicated region
  $region22: #{odefunc_forward_steps.1} parent=0 // pred_check
    _
  $region23: #{odefunc_forward_steps.1} parent=0 // pred_check_branch
    %155 = sbr.rel (0) target = $region25
  $region24: #{odefunc_forward_steps.1} parent=0 // pred_region
    _
  $region25: #{odefunc_forward_steps.1} parent=0 // pred_fallthru
    _
  // Predicated region
  $region26: #{odefunc_forward_steps.1} parent=0 // pred_check
    _
  $region27: #{odefunc_forward_steps.1} parent=0 // pred_check_branch
    %157 = sbr.rel (0) target = $region29
  $region28: #{odefunc_forward_steps.1} parent=0 // pred_region
    _
  $region29: #{odefunc_forward_steps.1} parent=0 // pred_fallthru
    _

</llo_original>
